<compile_context>
chip_gen: v6e
topology: v6e:2x2x1
jax: 0.10.0
libtpu: 0.0.40
codegen_flags: <defaults>
</compile_context>

<pallas_src>
import functools

import jax
import jax.numpy as jnp
from jax.experimental import pallas as pl
from jax.experimental.pallas import tpu as pltpu


def _round_up(n: int, m: int) -> int:
    return ((n + m - 1) // m) * m


def ncf_kernel(z_ref, w_ref, b_ref, out_ref):
    # z_ref  : [TB, 2K] VMEM  (concatenated user|item embeddings, lane-dense)
    # w_ref  : [1, 2K]  VMEM  (Linear weight row, torch layout [out=1, in=2K])
    # b_ref  : [1, 1]   SMEM  (Linear bias scalar)
    # out_ref: [TB, 1]  VMEM
    z = z_ref[...]                                    # [TB, 2K] f32
    w = w_ref[...]                                    # [1, 2K]  f32 (sublane-broadcast)
    # VPU elementwise multiply + XLU cross-lane reduce instead of an N=1 MXU matvec.
    logits = jnp.sum(z * w, axis=-1, keepdims=True)   # [TB, 1]
    logits = logits + b_ref[0, 0]
    out_ref[...] = jax.nn.sigmoid(logits)             # EUP


@functools.partial(jax.jit, static_argnames=("block_b",))
def ncf_forward(x, W, H, w1, b1, *, block_b: int = 2048):
    """NCF forward: sigmoid(Linear(concat(W[x[:,0]], H[x[:,1]]))).  Returns [B]."""
    # Gather + concat in the wrapper: XLA fuses these so the kernel reads one
    # lane-dense [B, 2K] buffer (no half-lane arrays, no in-kernel concat).
    z = jnp.concatenate(
        [jnp.take(W, x[:, 0], axis=0), jnp.take(H, x[:, 1], axis=0)], axis=1
    )                                                 # [B, 2K] f32
    B, two_k = z.shape

    # Tile the batch; pad to a multiple of the block so BlockSpecs stay aligned.
    bb = block_b if B >= block_b else _round_up(B, 8)
    b_pad = _round_up(B, bb)
    if b_pad != B:
        z = jnp.pad(z, ((0, b_pad - B), (0, 0)))

    w_row = w1.reshape(1, two_k).astype(jnp.float32)
    b_scalar = b1.reshape(1, 1).astype(jnp.float32)

    out2d = pl.pallas_call(
        ncf_kernel,
        out_shape=jax.ShapeDtypeStruct((b_pad, 1), jnp.float32),
        grid_spec=pltpu.PrefetchScalarGridSpec(
            num_scalar_prefetch=0,
            grid=(b_pad // bb,),
            in_specs=[
                pl.BlockSpec((bb, two_k), lambda i: (i, 0)),        # z tile (pipelined)
                pl.BlockSpec((1, two_k), lambda i: (0, 0)),         # weight row (resident)
                pl.BlockSpec(memory_space=pltpu.MemorySpace.SMEM),  # bias scalar
            ],
            out_specs=pl.BlockSpec((bb, 1), lambda i: (i, 0)),
        ),
        compiler_params=pltpu.CompilerParams(
            dimension_semantics=("parallel",),      # v7x: shard batch across 2 TCs
            vmem_limit_bytes=32 * 1024 * 1024,      # explicit; safe on v5e/v6e/v7x
        ),
    )(z, w_row, b_scalar)

    return out2d[:B, 0]                             # matches torch .squeeze() -> [B]


if __name__ == "__main__":
    # Small deterministic setup consistent with NCF.__init__ (embedding_k=64).
    num_users, num_items, K, B = 32, 48, 64, 300

    key = jax.random.PRNGKey(0)
    k1, k2, k3, k4, k5, k6 = jax.random.split(key, 6)

    # nn.Embedding default init ~ N(0, 1); nn.Linear init ~ U(-1/sqrt(fan_in), +1/sqrt(fan_in)).
    W = jax.random.normal(k1, (num_users, K), jnp.float32)
    H = jax.random.normal(k2, (num_items, K), jnp.float32)
    bound = float((2 * K) ** -0.5)
    w1 = jax.random.uniform(k3, (1, 2 * K), jnp.float32, -bound, bound)  # torch weight layout
    b1 = jax.random.uniform(k4, (1,), jnp.float32, -bound, bound)        # torch bias layout

    user_idx = jax.random.randint(k5, (B,), 0, num_users)
    item_idx = jax.random.randint(k6, (B,), 0, num_items)
    x = jnp.stack([user_idx, item_idx], axis=1).astype(jnp.int32)        # [B, 2]

    # block_b=128 exercises padding + a multi-step parallel grid even at small B.
    out = jax.block_until_ready(ncf_forward(x, W, H, w1, b1, block_b=128))

    # Pure-JAX reference of the torch forward (is_training=False path).
    z_ref = jnp.concatenate([W[x[:, 0]], H[x[:, 1]]], axis=1)
    ref = jax.nn.sigmoid(jnp.sum(z_ref * w1, axis=-1) + b1[0])

    assert out.shape == (B,)
    assert jnp.allclose(out, ref, atol=1e-5, rtol=1e-5)
    print("KERNEL_OK")
</pallas_src>

<mosaic_0001>
module attributes {stable_mosaic.version = 11 : i64} {
  func.func @ncf_kernel(%arg0: i32, %arg1: memref<128x128xf32, #tpu.memory_space<vmem>>, %arg2: memref<1x128xf32, #tpu.memory_space<vmem>>, %arg3: memref<1x1xf32, #tpu.memory_space<smem>>, %arg4: memref<128x1xf32, #tpu.memory_space<vmem>>) attributes {dimension_semantics = [#tpu.dimension_semantics<parallel>], iteration_bounds = array<i64: 3>, scalar_prefetch = 0 : i64, scratch_operands = 0 : i64, tpu.core_type = #tpu.core_type<tc>, window_params = [{transform_indices = @transform_0, window_bounds = array<i64: 128, 128>}, {pipeline_mode = #tpu.pipeline_mode<synchronous>, transform_indices = @transform_1, window_bounds = array<i64: 1, 128>}, {transform_indices = @transform_2, window_bounds = array<i64: 1, 1>}, {transform_indices = @transform_3, window_bounds = array<i64: 128, 1>}]} {
    %c0 = arith.constant 0 : index
    %c0_0 = arith.constant 0 : index
    %0 = vector.load %arg1[%c0, %c0_0] : memref<128x128xf32, #tpu.memory_space<vmem>>, vector<128x128xf32>
    %c0_1 = arith.constant 0 : index
    %c0_2 = arith.constant 0 : index
    %1 = vector.load %arg2[%c0_1, %c0_2] : memref<1x128xf32, #tpu.memory_space<vmem>>, vector<1x128xf32>
    %2 = vector.broadcast %1 : vector<1x128xf32> to vector<128x128xf32>
    %3 = arith.mulf %0, %2 : vector<128x128xf32>
    %cst = arith.constant dense<0.000000e+00> : vector<128xf32>
    %4 = vector.multi_reduction <add>, %3, %cst [1] : vector<128x128xf32> to vector<128xf32>
    %5 = vector.shape_cast %4 : vector<128xf32> to vector<128x1xf32>
    %c0_3 = arith.constant 0 : index
    %c0_4 = arith.constant 0 : index
    %6 = memref.load %arg3[%c0_3, %c0_4] : memref<1x1xf32, #tpu.memory_space<smem>>
    %7 = vector.broadcast %6 : f32 to vector<128x1xf32>
    %8 = arith.addf %5, %7 : vector<128x1xf32>
    %9 = arith.negf %8 : vector<128x1xf32>
    %10 = math.exp %9 : vector<128x1xf32>
    %cst_5 = arith.constant 1.000000e+00 : f32
    %11 = vector.broadcast %cst_5 : f32 to vector<128x1xf32>
    %12 = arith.addf %11, %10 : vector<128x1xf32>
    %13 = arith.divf %11, %12 : vector<128x1xf32>
    %c0_6 = arith.constant 0 : index
    %c0_7 = arith.constant 0 : index
    %14 = vector.load %arg4[%c0_6, %c0_7] : memref<128x1xf32, #tpu.memory_space<vmem>>, vector<128x1xf32>
    tpu.vector_store %arg4[%c0_6, %c0_7], %13 {strides = array<i32>} : memref<128x1xf32, #tpu.memory_space<vmem>>, vector<128x1xf32>,
    return
  }
  func.func @transform_0(%arg0: i32) -> (i32, i32) {
    %c0_i32 = arith.constant 0 : i32
    %c0_i32_0 = arith.constant 0 : i32
    return %arg0, %c0_i32 : i32, i32
  }
  func.func @transform_1(%arg0: i32) -> (i32, i32) {
    %c0_i32 = arith.constant 0 : i32
    %c0_i32_0 = arith.constant 0 : i32
    %c0_i32_1 = arith.constant 0 : i32
    return %c0_i32, %c0_i32_0 : i32, i32
  }
  func.func @transform_2(%arg0: i32) -> (i32, i32) {
    %c0_i32 = arith.constant 0 : i32
    %c0_i32_0 = arith.constant 0 : i32
    %c0_i32_1 = arith.constant 0 : i32
    return %c0_i32, %c0_i32_0 : i32, i32
  }
  func.func @transform_3(%arg0: i32) -> (i32, i32) {
    %c0_i32 = arith.constant 0 : i32
    %c0_i32_0 = arith.constant 0 : i32
    return %arg0, %c0_i32 : i32, i32
  }
}

</mosaic_0001>

<llo_original>
// kernel: ncf_forward.1
$region0: #{ncf_forward.1}
  #allocation0 [shape = 'u32[]', space=smem, size = 0x4, offset = 0x4, fixed_abs, tag = 'smem constant byte address 0x4 - core index']
  #allocation1 [shape = 'u32[144,128]{1,0:T(1,128)}', space=vmem, size = 0x12000, scoped, tag = 'internal scratch']
  #allocation2 [shape = 'f32[1,1]{1,0:T(1,128)S(6)}', space=smem, size = 0x200, scoped, tag = 'scoped memory for ncf_forward.1']
  %s0 = inlined_call_operand.vmem [shape: f32[384,128], index: 0, kind: input, shape index: {}]
  %s1 = inlined_call_operand.vmem [shape: f32[1,128], index: 1, kind: input, shape index: {}]
  %s2 = inlined_call_operand.<no memory space> [shape: f32[1,1], index: 2, kind: input, shape index: {}]
  %s3 = inlined_call_operand.vmem [shape: f32[384,1], index: 3, kind: output, shape index: {}]
  %s4 = sld [smem:[#allocation0]]
  $region45: #{ncf_forward.1} parent=0
    _
  %s6 = ssub.s32 1, %s4
  %s7 = scalar_select 0, %s6, %s4
  %8 = sst [smem:[#allocation2]] %s2
  loop: start=0, step=1, limit=5
  $region2: #{ncf_forward.1} parent=0 // loop_pre_header
    _
  $region3: #{ncf_forward.1} parent=0 // loop_header
    %s10 = sphi 0, %s14
    %p11 = scmp.ge.s32.totalorder %s10, 5
    %s20 = sphi 0, %s22
    %s23 = sphi 0, %s20
    %s24 = sphi 0, %s23
    %s40 = sphi 0, %s24
    %s44 = sphi 0, %s44
    %s46 = sphi 0, %s44
    %s47 = sphi 0, %s46
    %s61 = sphi 0, %s47
    %s65 = sphi 0, %s65
    %s67 = sphi 0, %s65
    %s68 = sphi 0, %s67
    %s82 = sphi 0, %s68
    %s88 = sphi 0, %s90
    %s91 = sphi 0, %s88
    %s92 = sphi 0, %s91
    %s108 = sphi 0, %s92
  $region4: #{ncf_forward.1} parent=0 // loop_header_branch
    %13 = sbr.rel (%p11) target = $region8
  $region5: #{ncf_forward.1} parent=0 // loop_body
    %s15 = ssub.s32 %s10, 1
    %s16 = ssub.s32 %s10, 2
    %s17 = sadd.s32 %s10, 1
    %s18 = ssub.s32 %s10, %s17
    %p19 = scmp.eq.s32.totalorder %s18, 0
    %s21 = sadd.s32 %s20, 1
    %s22 = scalar_select %p19, %s20, %s21
    %p25 = pneg %p19
    %p26 = scmp.eq.s32.totalorder %s10, 2
    %p27 = por %p25, %p26
    %p28 = scmp.ne.s32.totalorder %s20, %s23
    %p29 = scmp.eq.s32.totalorder %s10, 0
    %p30 = por %p28, %p29
    %p31 = scmp.ne.s32.totalorder %s20, %s23
    %p32 = scmp.eq.s32.totalorder %s15, 2
    %p33 = por %p31, %p32
    %p34 = scmp.ne.s32.totalorder %s23, %s24
    %p35 = scmp.eq.s32.totalorder %s15, 0
    %p36 = por %p34, %p35
    %p37 = scmp.ne.s32.totalorder %s23, %s24
    %p38 = scmp.eq.s32.totalorder %s16, 2
    %p39 = por %p37, %p38
    %p41 = scmp.ne.s32.totalorder %s24, %s40
    %p42 = scmp.eq.s32.totalorder %s16, 0
    %p43 = por %p41, %p42
    %s45 = sadd.s32 %s44, 1
    %p48 = scmp.eq.s32.totalorder %s10, 2
    %p49 = scmp.ne.s32.totalorder %s44, %s46
    %p50 = scmp.eq.s32.totalorder %s10, 0
    %p51 = por %p49, %p50
    %p52 = scmp.ne.s32.totalorder %s44, %s46
    %p53 = scmp.eq.s32.totalorder %s15, 2
    %p54 = por %p52, %p53
    %p55 = scmp.ne.s32.totalorder %s46, %s47
    %p56 = scmp.eq.s32.totalorder %s15, 0
    %p57 = por %p55, %p56
    %p58 = scmp.ne.s32.totalorder %s46, %s47
    %p59 = scmp.eq.s32.totalorder %s16, 2
    %p60 = por %p58, %p59
    %p62 = scmp.ne.s32.totalorder %s47, %s61
    %p63 = scmp.eq.s32.totalorder %s16, 0
    %p64 = por %p62, %p63
    %s66 = sadd.s32 %s65, 1
    %p69 = scmp.eq.s32.totalorder %s10, 2
    %p70 = scmp.ne.s32.totalorder %s65, %s67
    %p71 = scmp.eq.s32.totalorder %s10, 0
    %p72 = por %p70, %p71
    %p73 = scmp.ne.s32.totalorder %s65, %s67
    %p74 = scmp.eq.s32.totalorder %s15, 2
    %p75 = por %p73, %p74
    %p76 = scmp.ne.s32.totalorder %s67, %s68
    %p77 = scmp.eq.s32.totalorder %s15, 0
    %p78 = por %p76, %p77
    %p79 = scmp.ne.s32.totalorder %s67, %s68
    %p80 = scmp.eq.s32.totalorder %s16, 2
    %p81 = por %p79, %p80
    %p83 = scmp.ne.s32.totalorder %s68, %s82
    %p84 = scmp.eq.s32.totalorder %s16, 0
    %p85 = por %p83, %p84
    %s86 = ssub.s32 %s10, %s17
    %p87 = scmp.eq.s32.totalorder %s86, 0
    %s89 = sadd.s32 %s88, 1
    %s90 = scalar_select %p87, %s88, %s89
    %p93 = pneg %p87
    %p94 = scmp.eq.s32.totalorder %s10, 2
    %p95 = por %p93, %p94
    %p96 = scmp.ne.s32.totalorder %s88, %s91
    %p97 = scmp.eq.s32.totalorder %s10, 0
    %p98 = por %p96, %p97
    %p99 = scmp.ne.s32.totalorder %s88, %s91
    %p100 = scmp.eq.s32.totalorder %s15, 2
    %p101 = por %p99, %p100
    %p102 = scmp.ne.s32.totalorder %s91, %s92
    %p103 = scmp.eq.s32.totalorder %s15, 0
    %p104 = por %p102, %p103
    %p105 = scmp.ne.s32.totalorder %s91, %s92
    %p106 = scmp.eq.s32.totalorder %s16, 2
    %p107 = por %p105, %p106
    %p109 = scmp.ne.s32.totalorder %s92, %s108
    %p110 = scmp.eq.s32.totalorder %s16, 0
    %p111 = por %p109, %p110
    %p112 = scmp.le.s32.totalorder 1, %s10
    %p113 = scmp.lt.s32.totalorder %s10, 4
    %p114 = pnand %p112, %p113
    %p115 = pneg %p114
    // Predicated region
    $region9: #{ncf_forward.1} parent=5 // pred_check
      _
    $region10: #{ncf_forward.1} parent=5 // pred_check_branch
      %117 = sbr.rel (%p114) target = $region12
    $region11: #{ncf_forward.1} parent=5 // pred_region
      %s118 = ssub.s32 %s10, 1
      // Predicated region
      $region13: #{ncf_forward.1} parent=11 // pred_check
        %p119 = pneg %p57
      $region14: #{ncf_forward.1} parent=11 // pred_check_branch
        %121 = sbr.rel (%p119) target = $region16
      $region15: #{ncf_forward.1} parent=11 // pred_region
        _
      $region16: #{ncf_forward.1} parent=11 // pred_fallthru
        _
      // Predicated region
      $region17: #{ncf_forward.1} parent=11 // pred_check
        %p122 = pneg %p78
      $region18: #{ncf_forward.1} parent=11 // pred_check_branch
        %124 = sbr.rel (%p122) target = $region20
      $region19: #{ncf_forward.1} parent=11 // pred_region
        _
      $region20: #{ncf_forward.1} parent=11 // pred_fallthru
        _
    $region12: #{ncf_forward.1} parent=5 // pred_fallthru
      _
    %p125 = scmp.lt.s32.totalorder %s10, 3
    // Predicated region
    $region21: #{ncf_forward.1} parent=5 // pred_check
      %p126 = pneg %p125
    $region22: #{ncf_forward.1} parent=5 // pred_check_branch
      %128 = sbr.rel (%p126) target = $region24
    $region23: #{ncf_forward.1} parent=5 // pred_region
      // Predicated region
      $region25: #{ncf_forward.1} parent=23 // pred_check
        %p129 = pneg %p30
      $region26: #{ncf_forward.1} parent=23 // pred_check_branch
        %131 = sbr.rel (%p129) target = $region28
      $region27: #{ncf_forward.1} parent=23 // pred_region
        %s132 = smul.u32 16, %s10
        %p133 = scmp.lt.s32.totalorder %s132, 47
        %s134 = scalar_select %p133, %s132, 47
        %s135 = smul.addr %s134, 8
        %s136 = scalar_lea.vmem %s0, %s135
        %s137 = smul.u32 16, %s10
      $region28: #{ncf_forward.1} parent=23 // pred_fallthru
        _
    $region24: #{ncf_forward.1} parent=5 // pred_fallthru
      _
    %p138 = scmp.le.s32.totalorder 1, %s10
    %p139 = scmp.lt.s32.totalorder %s10, 4
    %p140 = pnand %p138, %p139
    %p141 = pneg %p140
    // Predicated region
    $region29: #{ncf_forward.1} parent=5 // pred_check
      _
    $region30: #{ncf_forward.1} parent=5 // pred_check_branch
      %143 = sbr.rel (%p140) target = $region32
    $region31: #{ncf_forward.1} parent=5 // pred_region
      %s144 = ssub.s32 %s10, 1
      %s145 = smul.u32 16, %s15
      %p146 = scmp.lt.s32.totalorder %s145, 47
      %s147 = scalar_select %p146, %s145, 47
      %s148 = smul.addr %s147, 8
      %s149 = scalar_lea.vmem %s0, %s148
      %p150 = pneg %p36
      %p151 = pneg %p33
      %p152 = pneg %p57
      %p153 = pneg %p54
      %p154 = pneg %p78
      %p155 = pneg %p75
      %p156 = pneg %p104
      %p157 = pneg %p101
      %s158 = smul.u32 16, %s15
      %p159 = scmp.lt.s32.totalorder %s158, 47
      %s160 = scalar_select %p159, %s158, 47
      %s161 = smul.addr %s160, 8
      %s162 = scalar_lea.vmem %s3, %s161
      %s163 = smul.u32 16, %s15
      %p164 = scmp.lt.s32.totalorder %s163, 47
      %s165 = scalar_select %p164, %s163, 47
      %s166 = smul.addr %s165, 8
      %s167 = scalar_lea.vmem %s0, %s166
      %s168 = smul.u32 16, %s15
      %s169 = smul.u32 16, %s15
      %p170 = scmp.lt.s32.totalorder %s169, 47
      %s171 = scalar_select %p170, %s169, 47
      %s172 = smul.addr %s171, 8
      %s173 = scalar_lea.vmem %s3, %s172
      %s174 = smul.u32 16, %s15
      %v175 = vld [vmem:[%s167] sm:$0xff]
      %v176 = vld [vmem:[%s167 + $0x8] sm:$0xff]
      %v177 = vld [vmem:[%s167 + $0x10] sm:$0xff]
      %v178 = vld [vmem:[%s167 + $0x18] sm:$0xff]
      %v179 = vld [vmem:[%s167 + $0x20] sm:$0xff]
      %v180 = vld [vmem:[%s167 + $0x28] sm:$0xff]
      %v181 = vld [vmem:[%s167 + $0x30] sm:$0xff]
      %v182 = vld [vmem:[%s167 + $0x38] sm:$0xff]
      %v183 = vld [vmem:[%s167 + $0x40] sm:$0xff]
      %v184 = vld [vmem:[%s167 + $0x48] sm:$0xff]
      %v185 = vld [vmem:[%s167 + $0x50] sm:$0xff]
      %v186 = vld [vmem:[%s167 + $0x58] sm:$0xff]
      %v187 = vld [vmem:[%s167 + $0x60] sm:$0xff]
      %v188 = vld [vmem:[%s167 + $0x68] sm:$0xff]
      %v189 = vld [vmem:[%s167 + $0x70] sm:$0xff]
      %v190 = vld [vmem:[%s167 + $0x78] sm:$0xff]
      %v191 = vld [vmem:[%s1] sm:$0x1]
      %v193 = vlaneseq
      %v194 = vshrl.u32 %v193, 7
      %v195 = vsub.s32 0, %v194
      %v196 = vrot.slane %v191, %v195
      %v198 = vmul.f32 %v175, %v196
      %v199 = vmul.f32 %v176, %v196
      %v200 = vmul.f32 %v177, %v196
      %v201 = vmul.f32 %v178, %v196
      %v202 = vmul.f32 %v179, %v196
      %v203 = vmul.f32 %v180, %v196
      %v204 = vmul.f32 %v181, %v196
      %v205 = vmul.f32 %v182, %v196
      %v206 = vmul.f32 %v183, %v196
      %v207 = vmul.f32 %v184, %v196
      %v208 = vmul.f32 %v185, %v196
      %v209 = vmul.f32 %v186, %v196
      %v210 = vmul.f32 %v187, %v196
      %v211 = vmul.f32 %v188, %v196
      %v212 = vmul.f32 %v189, %v196
      %v213 = vmul.f32 %v190, %v196
      %214 = vadd.xlane.f32.xlu0 %v198
      %v215 = vpop.xlane.xlu0 %214
      %216 = vadd.xlane.f32.xlu0 %v199
      %v217 = vpop.xlane.xlu0 %216
      %218 = vadd.xlane.f32.xlu0 %v200
      %v219 = vpop.xlane.xlu0 %218
      %220 = vadd.xlane.f32.xlu0 %v201
      %v221 = vpop.xlane.xlu0 %220
      %222 = vadd.xlane.f32.xlu0 %v202
      %v223 = vpop.xlane.xlu0 %222
      %224 = vadd.xlane.f32.xlu0 %v203
      %v225 = vpop.xlane.xlu0 %224
      %226 = vadd.xlane.f32.xlu0 %v204
      %v227 = vpop.xlane.xlu0 %226
      %228 = vadd.xlane.f32.xlu0 %v205
      %v229 = vpop.xlane.xlu0 %228
      %230 = vadd.xlane.f32.xlu0 %v206
      %v231 = vpop.xlane.xlu0 %230
      %232 = vadd.xlane.f32.xlu0 %v207
      %v233 = vpop.xlane.xlu0 %232
      %234 = vadd.xlane.f32.xlu0 %v208
      %v235 = vpop.xlane.xlu0 %234
      %236 = vadd.xlane.f32.xlu0 %v209
      %v237 = vpop.xlane.xlu0 %236
      %238 = vadd.xlane.f32.xlu0 %v210
      %v239 = vpop.xlane.xlu0 %238
      %240 = vadd.xlane.f32.xlu0 %v211
      %v241 = vpop.xlane.xlu0 %240
      %242 = vadd.xlane.f32.xlu0 %v212
      %v243 = vpop.xlane.xlu0 %242
      %244 = vadd.xlane.f32.xlu0 %v213
      %v245 = vpop.xlane.xlu0 %244
      %s246 = sld [smem:[#allocation2]]
      %v247 = vstv %s246
      %v248 = vadd.f32 %v215, %v247
      %v249 = vadd.f32 %v217, %v247
      %v250 = vadd.f32 %v219, %v247
      %v251 = vadd.f32 %v221, %v247
      %v252 = vadd.f32 %v223, %v247
      %v253 = vadd.f32 %v225, %v247
      %v254 = vadd.f32 %v227, %v247
      %v255 = vadd.f32 %v229, %v247
      %v256 = vadd.f32 %v231, %v247
      %v257 = vadd.f32 %v233, %v247
      %v258 = vadd.f32 %v235, %v247
      %v259 = vadd.f32 %v237, %v247
      %v260 = vadd.f32 %v239, %v247
      %v261 = vadd.f32 %v241, %v247
      %v262 = vadd.f32 %v243, %v247
      %v263 = vadd.f32 %v245, %v247
      %v264 = vxor.u32 %v248, 2147483648
      %v265 = vxor.u32 %v249, 2147483648
      %v266 = vxor.u32 %v250, 2147483648
      %v267 = vxor.u32 %v251, 2147483648
      %v268 = vxor.u32 %v252, 2147483648
      %v269 = vxor.u32 %v253, 2147483648
      %v270 = vxor.u32 %v254, 2147483648
      %v271 = vxor.u32 %v255, 2147483648
      %v272 = vxor.u32 %v256, 2147483648
      %v273 = vxor.u32 %v257, 2147483648
      %v274 = vxor.u32 %v258, 2147483648
      %v275 = vxor.u32 %v259, 2147483648
      %v276 = vxor.u32 %v260, 2147483648
      %v277 = vxor.u32 %v261, 2147483648
      %v278 = vxor.u32 %v262, 2147483648
      %v279 = vxor.u32 %v263, 2147483648
      %v280 = vmul.f32 %v264, 1.442695
      %v281 = vpow.pop %v280
      %v282 = vmul.f32 %v265, 1.442695
      %v283 = vpow.pop %v282
      %v284 = vmul.f32 %v266, 1.442695
      %v285 = vpow.pop %v284
      %v286 = vmul.f32 %v267, 1.442695
      %v287 = vpow.pop %v286
      %v288 = vmul.f32 %v268, 1.442695
      %v289 = vpow.pop %v288
      %v290 = vmul.f32 %v269, 1.442695
      %v291 = vpow.pop %v290
      %v292 = vmul.f32 %v270, 1.442695
      %v293 = vpow.pop %v292
      %v294 = vmul.f32 %v271, 1.442695
      %v295 = vpow.pop %v294
      %v296 = vmul.f32 %v272, 1.442695
      %v297 = vpow.pop %v296
      %v298 = vmul.f32 %v273, 1.442695
      %v299 = vpow.pop %v298
      %v300 = vmul.f32 %v274, 1.442695
      %v301 = vpow.pop %v300
      %v302 = vmul.f32 %v275, 1.442695
      %v303 = vpow.pop %v302
      %v304 = vmul.f32 %v276, 1.442695
      %v305 = vpow.pop %v304
      %v306 = vmul.f32 %v277, 1.442695
      %v307 = vpow.pop %v306
      %v308 = vmul.f32 %v278, 1.442695
      %v309 = vpow.pop %v308
      %v310 = vmul.f32 %v279, 1.442695
      %v311 = vpow.pop %v310
      %v312 = vadd.f32 %v281, 1.0
      %v313 = vadd.f32 %v283, 1.0
      %v314 = vadd.f32 %v285, 1.0
      %v315 = vadd.f32 %v287, 1.0
      %v316 = vadd.f32 %v289, 1.0
      %v317 = vadd.f32 %v291, 1.0
      %v318 = vadd.f32 %v293, 1.0
      %v319 = vadd.f32 %v295, 1.0
      %v320 = vadd.f32 %v297, 1.0
      %v321 = vadd.f32 %v299, 1.0
      %v322 = vadd.f32 %v301, 1.0
      %v323 = vadd.f32 %v303, 1.0
      %v324 = vadd.f32 %v305, 1.0
      %v325 = vadd.f32 %v307, 1.0
      %v326 = vadd.f32 %v309, 1.0
      %v327 = vadd.f32 %v311, 1.0
      %v328 = vrcp.pop %v312
      %v329 = vmul.f32 1.0, %v328
      %v330 = vrcp.pop %v313
      %v331 = vmul.f32 1.0, %v330
      %v332 = vrcp.pop %v314
      %v333 = vmul.f32 1.0, %v332
      %v334 = vrcp.pop %v315
      %v335 = vmul.f32 1.0, %v334
      %v336 = vrcp.pop %v316
      %v337 = vmul.f32 1.0, %v336
      %v338 = vrcp.pop %v317
      %v339 = vmul.f32 1.0, %v338
      %v340 = vrcp.pop %v318
      %v341 = vmul.f32 1.0, %v340
      %v342 = vrcp.pop %v319
      %v343 = vmul.f32 1.0, %v342
      %v344 = vrcp.pop %v320
      %v345 = vmul.f32 1.0, %v344
      %v346 = vrcp.pop %v321
      %v347 = vmul.f32 1.0, %v346
      %v348 = vrcp.pop %v322
      %v349 = vmul.f32 1.0, %v348
      %v350 = vrcp.pop %v323
      %v351 = vmul.f32 1.0, %v350
      %v352 = vrcp.pop %v324
      %v353 = vmul.f32 1.0, %v352
      %v354 = vrcp.pop %v325
      %v355 = vmul.f32 1.0, %v354
      %v356 = vrcp.pop %v326
      %v357 = vmul.f32 1.0, %v356
      %v358 = vrcp.pop %v327
      %v359 = vmul.f32 1.0, %v358
      %vm360 = vcmask 7168
      %361 = vst.msk [vmem:[%s173] sm:$0xff] %vm360, %v329
      %362 = vst.msk [vmem:[%s173 + $0x8] sm:$0xff] %vm360, %v331
      %363 = vst.msk [vmem:[%s173 + $0x10] sm:$0xff] %vm360, %v333
      %364 = vst.msk [vmem:[%s173 + $0x18] sm:$0xff] %vm360, %v335
      %365 = vst.msk [vmem:[%s173 + $0x20] sm:$0xff] %vm360, %v337
      %366 = vst.msk [vmem:[%s173 + $0x28] sm:$0xff] %vm360, %v339
      %367 = vst.msk [vmem:[%s173 + $0x30] sm:$0xff] %vm360, %v341
      %368 = vst.msk [vmem:[%s173 + $0x38] sm:$0xff] %vm360, %v343
      %369 = vst.msk [vmem:[%s173 + $0x40] sm:$0xff] %vm360, %v345
      %370 = vst.msk [vmem:[%s173 + $0x48] sm:$0xff] %vm360, %v347
      %371 = vst.msk [vmem:[%s173 + $0x50] sm:$0xff] %vm360, %v349
      %372 = vst.msk [vmem:[%s173 + $0x58] sm:$0xff] %vm360, %v351
      %373 = vst.msk [vmem:[%s173 + $0x60] sm:$0xff] %vm360, %v353
      %374 = vst.msk [vmem:[%s173 + $0x68] sm:$0xff] %vm360, %v355
      %375 = vst.msk [vmem:[%s173 + $0x70] sm:$0xff] %vm360, %v357
      %376 = vst.msk [vmem:[%s173 + $0x78] sm:$0xff] %vm360, %v359
      %s377 = smul.u32 16, %s15
      %p378 = scmp.lt.s32.totalorder %s377, 47
      %s379 = scalar_select %p378, %s377, 47
      %s380 = smul.addr %s379, 8
      %s381 = scalar_lea.vmem %s3, %s380
      // Predicated region
      $region33: #{ncf_forward.1} parent=31 // pred_check
        %p382 = pneg %p101
      $region34: #{ncf_forward.1} parent=31 // pred_check_branch
        %384 = sbr.rel (%p382) target = $region36
      $region35: #{ncf_forward.1} parent=31 // pred_region
        %s385 = smul.u32 16, %s15
      $region36: #{ncf_forward.1} parent=31 // pred_fallthru
        _
    $region32: #{ncf_forward.1} parent=5 // pred_fallthru
      _
    %p386 = scmp.le.s32.totalorder 2, %s10
    // Predicated region
    $region37: #{ncf_forward.1} parent=5 // pred_check
      %p387 = pneg %p386
    $region38: #{ncf_forward.1} parent=5 // pred_check_branch
      %389 = sbr.rel (%p387) target = $region40
    $region39: #{ncf_forward.1} parent=5 // pred_region
      %s390 = ssub.s32 %s10, 2
      // Predicated region
      $region41: #{ncf_forward.1} parent=39 // pred_check
        %p391 = pneg %p107
      $region42: #{ncf_forward.1} parent=39 // pred_check_branch
        %393 = sbr.rel (%p391) target = $region44
      $region43: #{ncf_forward.1} parent=39 // pred_region
        %s394 = smul.u32 16, %s16
        %p395 = scmp.lt.s32.totalorder %s394, 47
        %s396 = scalar_select %p395, %s394, 47
        %s397 = smul.addr %s396, 8
        %s398 = scalar_lea.vmem %s3, %s397
      $region44: #{ncf_forward.1} parent=39 // pred_fallthru
        _
    $region40: #{ncf_forward.1} parent=5 // pred_fallthru
      _
  $region6: #{ncf_forward.1} parent=0 // loop_footer
    %s14 = sadd.s32 1, %s10
  $region7: #{ncf_forward.1} parent=0 // loop_footer_branch
    %9 = sbr.rel target = $region3
  $region8: #{ncf_forward.1} parent=0 // loop_exit
    _

</llo_original>
